<compile_context>
chip_gen: v5e
topology: v5e:2x2
jax: 0.10.0
libtpu: 0.0.40
codegen_flags: <defaults>
</compile_context>

<pallas_src>
import functools

import numpy as np
import jax
import jax.numpy as jnp
from jax.experimental import pallas as pl
from jax.experimental.pallas import tpu as pltpu


# ---------------------------------------------------------------------------
# helpers
# ---------------------------------------------------------------------------
def _round_up(x, m):
    return ((x + m - 1) // m) * m


# Safe on all generations (v7x has 64 MiB physical VMEM per TC); working sets
# here are a few MiB so this is just an explicit, generous scoped limit.
VMEM_LIMIT = 48 * 1024 * 1024

# Default (maximum) tiles; wrappers shrink them for small problems so padding
# stays bounded.  512 is a multiple of 128 (fills v5e's 128x128 MXUs too).
ROW_TILE = 512
NODE_TILE = 256
EDGE_TILE = 512


# ---------------------------------------------------------------------------
# Pallas kernels
# ---------------------------------------------------------------------------
def _make_fused_mlp_kernel(n_in, residual_idx):
    """Fused (sum_i x_i@W1_i + b1) -> ReLU -> Linear -> ReLU -> Linear -> LN.

    Matmul operands are cast to bf16 (f32 accumulation); bias add, ReLU,
    LayerNorm (eps=1e-5, torch default) and the residual add stay in f32.
    """

    def kernel(*refs):
        ins = refs[:n_in]
        w1p = refs[n_in:2 * n_in]
        b1, w2, b2, w3, b3, gamma, beta = refs[2 * n_in:2 * n_in + 7]
        o_ref = refs[2 * n_in + 7]

        acc = None
        for x_ref, w_ref in zip(ins, w1p):
            part = jnp.dot(x_ref[...].astype(jnp.bfloat16), w_ref[...],
                           preferred_element_type=jnp.float32)
            acc = part if acc is None else acc + part
        h = jnp.maximum(acc + b1[...], 0.0)
        h = jnp.dot(h.astype(jnp.bfloat16), w2[...],
                    preferred_element_type=jnp.float32) + b2[...]
        h = jnp.maximum(h, 0.0)
        y = jnp.dot(h.astype(jnp.bfloat16), w3[...],
                    preferred_element_type=jnp.float32) + b3[...]

        mu = jnp.mean(y, axis=-1, keepdims=True)
        var = jnp.mean(jnp.square(y - mu), axis=-1, keepdims=True)
        y = (y - mu) * jax.lax.rsqrt(var + 1e-5) * gamma[...] + beta[...]

        if residual_idx is not None:
            res = ins[residual_idx][...]
            if res.shape[-1] != y.shape[-1]:
                res = res[:, :y.shape[-1]]
            y = y + res
        o_ref[...] = y

    return kernel


def _node_processor_kernel(col_ref, e_ref, x_ref,
                           w1x, w1e, b1, w2, b2, w3, b3, gamma, beta,
                           o_ref, agg_ref, *, node_tile, edge_tile):
    """Fused NodeProcessor.

    Edge-block reduction:  agg[n,:] += sum_e [col[e]==n] * e[e,:]
    (one-hot x edge_attr MXU matmul into an f32 VMEM accumulator).
    On the last edge block:  MLP(cat(x, agg)) -> LayerNorm -> + x
    with the concat fused via split W1 (x@W1x + agg@W1e).
    """
    i = pl.program_id(0)          # node block   (parallel)
    j = pl.program_id(1)          # edge block   (reduction, arbitrary)

    @pl.when(j == 0)
    def _():
        agg_ref[...] = jnp.zeros_like(agg_ref)

    node_ids = (jax.lax.broadcasted_iota(jnp.int32, (node_tile, edge_tile), 0)
                + i * node_tile)
    onehot = (node_ids == col_ref[...]).astype(jnp.bfloat16)   # exact 0/1 in bf16
    agg_ref[...] += jnp.dot(onehot, e_ref[...],
                            preferred_element_type=jnp.float32)

    @pl.when(j == pl.num_programs(1) - 1)
    def _():
        x = x_ref[...]
        acc = (jnp.dot(x.astype(jnp.bfloat16), w1x[...],
                       preferred_element_type=jnp.float32)
               + jnp.dot(agg_ref[...].astype(jnp.bfloat16), w1e[...],
                         preferred_element_type=jnp.float32)
               + b1[...])
        h = jnp.maximum(acc, 0.0)
        h = jnp.dot(h.astype(jnp.bfloat16), w2[...],
                    preferred_element_type=jnp.float32) + b2[...]
        h = jnp.maximum(h, 0.0)
        y = jnp.dot(h.astype(jnp.bfloat16), w3[...],
                    preferred_element_type=jnp.float32) + b3[...]

        mu = jnp.mean(y, axis=-1, keepdims=True)
        var = jnp.mean(jnp.square(y - mu), axis=-1, keepdims=True)
        y = (y - mu) * jax.lax.rsqrt(var + 1e-5) * gamma[...] + beta[...]

        o_ref[...] = y + x[:, :y.shape[-1]]          # residual (+x)


# ---------------------------------------------------------------------------
# Pallas wrappers
# ---------------------------------------------------------------------------
def fused_mlp_ln(inputs, pp, residual_idx=None, row_tile=ROW_TILE):
    """Apply the fused MLP+LayerNorm kernel row-wise.

    inputs: list of [R, d_i] arrays (same R); pp: prepped params with W1 split
    into one bf16 piece per input (contraction dims pre-padded to x8).
    """
    inputs = [x.astype(jnp.float32) for x in inputs]
    R = inputs[0].shape[0]
    dout = pp["w3"].shape[1]

    # Adaptive tile: big enough to fill the MXU on large R, shrinks for small
    # R so row padding is bounded (always a multiple of 8 sublanes).
    row_tile = min(row_tile, _round_up(max(R, 8), 8))
    r_p = _round_up(R, row_tile)

    padded_inputs = []
    for x, w in zip(inputs, pp["w1_parts"]):
        d, d_p = x.shape[1], w.shape[0]
        if r_p != R or d_p != d:
            x = jnp.pad(x, ((0, r_p - R), (0, d_p - d)))
        padded_inputs.append(x)

    weights = list(pp["w1_parts"]) + [pp["b1"], pp["w2"], pp["b2"],
                                      pp["w3"], pp["b3"], pp["gamma"], pp["beta"]]

    full = lambda a: pl.BlockSpec(a.shape, lambda i: (0, 0))
    in_specs = ([pl.BlockSpec((row_tile, x.shape[1]), lambda i: (i, 0))
                 for x in padded_inputs]
                + [full(w) for w in weights])

    out = pl.pallas_call(
        _make_fused_mlp_kernel(len(padded_inputs), residual_idx),
        out_shape=jax.ShapeDtypeStruct((r_p, dout), jnp.float32),
        grid=(r_p // row_tile,),
        in_specs=in_specs,
        out_specs=pl.BlockSpec((row_tile, dout), lambda i: (i, 0)),
        compiler_params=pltpu.CompilerParams(
            dimension_semantics=("parallel",),
            vmem_limit_bytes=VMEM_LIMIT),
    )(*padded_inputs, *weights)
    return out[:R]


def node_processor(x, edge_attr, col, pp,
                   node_tile=NODE_TILE, edge_tile=EDGE_TILE):
    """Fused NodeProcessor: scatter_add(edge_attr, col) + MLP + LN + residual."""
    N, F = x.shape
    E, Fe = edge_attr.shape
    dout = pp["w3"].shape[1]
    F_pad = pp["w1_parts"][0].shape[0]
    Fe_pad = pp["w1_parts"][1].shape[0]

    node_tile = min(node_tile, _round_up(max(N, 8), 8))
    edge_tile = min(edge_tile, _round_up(max(E, 128), 128))
    n_pad = _round_up(N, node_tile)
    e_pad = _round_up(E, edge_tile)

    x_p = x.astype(jnp.float32)
    if n_pad != N or F_pad != F:
        x_p = jnp.pad(x_p, ((0, n_pad - N), (0, F_pad - F)))

    e_p = edge_attr.astype(jnp.float32)
    if e_pad != E or Fe_pad != Fe:
        e_p = jnp.pad(e_p, ((0, e_pad - E), (0, Fe_pad - Fe)))
    e_p = e_p.astype(jnp.bfloat16)                    # halve edge-table DMA

    col_p = col.astype(jnp.int32)
    if e_pad != E:
        col_p = jnp.pad(col_p, (0, e_pad - E), constant_values=-1)
    col_p = col_p.reshape(1, e_pad)

    w1x, w1e = pp["w1_parts"]
    weights = [w1x, w1e, pp["b1"], pp["w2"], pp["b2"], pp["w3"], pp["b3"],
               pp["gamma"], pp["beta"]]
    full = lambda a: pl.BlockSpec(a.shape, lambda i, j: (0, 0))

    kernel = functools.partial(_node_processor_kernel,
                               node_tile=node_tile, edge_tile=edge_tile)
    out = pl.pallas_call(
        kernel,
        out_shape=jax.ShapeDtypeStruct((n_pad, dout), jnp.float32),
        grid=(n_pad // node_tile, e_pad // edge_tile),
        in_specs=([pl.BlockSpec((1, edge_tile), lambda i, j: (0, j)),
                   pl.BlockSpec((edge_tile, Fe_pad), lambda i, j: (j, 0)),
                   pl.BlockSpec((node_tile, F_pad), lambda i, j: (i, 0))]
                  + [full(w) for w in weights]),
        out_specs=pl.BlockSpec((node_tile, dout), lambda i, j: (i, 0)),
        scratch_shapes=[pltpu.VMEM((node_tile, Fe_pad), jnp.float32)],
        compiler_params=pltpu.CompilerParams(
            dimension_semantics=("parallel", "arbitrary"),
            vmem_limit_bytes=VMEM_LIMIT),
    )(col_p, e_p, x_p, *weights)
    return out[:N]


# ---------------------------------------------------------------------------
# parameter construction (deterministic, torch-Linear-like uniform init)
# ---------------------------------------------------------------------------
def make_mlp_params(key, din, hid, dout):
    def lin(k, i, o):
        bound = 1.0 / np.sqrt(i)
        kw, kb = jax.random.split(k)
        w = jax.random.uniform(kw, (i, o), jnp.float32, -bound, bound)
        b = jax.random.uniform(kb, (1, o), jnp.float32, -bound, bound)
        return w, b

    k1, k2, k3 = jax.random.split(key, 3)
    w1, b1 = lin(k1, din, hid)
    w2, b2 = lin(k2, hid, hid)
    w3, b3 = lin(k3, hid, dout)
    return dict(w1=w1, b1=b1, w2=w2, b2=b2, w3=w3, b3=b3,
                gamma=jnp.ones((1, dout), jnp.float32),
                beta=jnp.zeros((1, dout), jnp.float32))


def prep_mlp_params(p, split_dims=None):
    """One-time prep: split W1 per fused input, zero-pad contraction dims to
    multiples of 8, cast matmul weights to bf16 (biases/LN params stay f32)."""
    w1 = p["w1"]
    if split_dims is None:
        split_dims = (w1.shape[0],)
    pieces, off = [], 0
    for d in split_dims:
        piece = w1[off:off + d]
        d_p = _round_up(max(d, 8), 8)
        if d_p != d:
            piece = jnp.pad(piece, ((0, d_p - d), (0, 0)))
        pieces.append(piece.astype(jnp.bfloat16))
        off += d
    return dict(w1_parts=tuple(pieces),
                b1=p["b1"],
                w2=p["w2"].astype(jnp.bfloat16), b2=p["b2"],
                w3=p["w3"].astype(jnp.bfloat16), b3=p["b3"],
                gamma=p["gamma"], beta=p["beta"])


def make_assimilator_params(key, input_dim, output_dim, output_edge_dim,
                            hid_node, hid_edge):
    ks = jax.random.split(key, 5)
    raw = dict(
        node_encoder=make_mlp_params(ks[0], input_dim, hid_node, output_dim),
        edge_encoder=make_mlp_params(ks[1], 3, hid_edge, output_edge_dim),
        latent_edge_encoder=make_mlp_params(ks[2], 2, hid_edge, output_edge_dim),
        gp_edge=make_mlp_params(ks[3], 2 * output_dim + output_edge_dim,
                                hid_edge, output_edge_dim),
        gp_node=make_mlp_params(ks[4], output_dim + output_edge_dim,
                                hid_node, output_dim),
    )
    return dict(
        node_encoder=prep_mlp_params(raw["node_encoder"]),
        edge_encoder=prep_mlp_params(raw["edge_encoder"]),
        latent_edge_encoder=prep_mlp_params(raw["latent_edge_encoder"]),
        # W1 split so the EdgeProcessor gather+concat fuses into the kernel:
        gp_edge=prep_mlp_params(raw["gp_edge"],
                                split_dims=(output_dim, output_dim, output_edge_dim)),
        gp_node=prep_mlp_params(raw["gp_node"],
                                split_dims=(output_dim, output_edge_dim)),
    )


# ---------------------------------------------------------------------------
# synthetic graph construction (replaces the h3 library — see TODO above)
# ---------------------------------------------------------------------------
def build_synthetic_graphs(n_obs, n_h3, heights):
    # input graph: obs node i -> h3 node (n_obs + (2*i+1) % n_h3)
    src = np.arange(n_obs, dtype=np.int32)
    tgt = (n_obs + (2 * src + 1) % n_h3).astype(np.int32)
    in_edge_index = np.stack([src, tgt], axis=0)
    d = 0.1 * (src + 1.0)
    in_edge_attr = np.stack([np.sin(d), np.cos(d), heights], axis=-1).astype(np.float32)

    # latent graph: each h3 node connects to itself + 6 "neighbours"
    es, et, ea = [], [], []
    for j in range(n_h3):
        for k in range(7):
            es.append(j)
            et.append((j + k) % n_h3)
            dk = 0.05 * k
            ea.append([np.sin(dk), np.cos(dk)])
    lat_edge_index = np.array([es, et], dtype=np.int32)
    lat_edge_attr = np.array(ea, dtype=np.float32)
    return in_edge_index, in_edge_attr, lat_edge_index, lat_edge_attr


# ---------------------------------------------------------------------------
# AssimilatorEncoder.forward
# ---------------------------------------------------------------------------
def assimilator_encoder_forward(params, features, lat_lon_heights, graph,
                                n_h3, output_dim):
    B, n_obs, input_dim = features.shape
    in_ei, in_eattr, lat_ei, lat_eattr = graph
    n_total = n_obs + n_h3

    # --- node encoder -------------------------------------------------------
    # The B*n_h3 h3 rows are all-zero inputs -> identical MLP outputs; encode
    # one zero row and broadcast (exact same result, n_h3*B-1 fewer rows).
    obs_flat = features.reshape(B * n_obs, input_dim).astype(jnp.float32)
    enc_in = jnp.concatenate([obs_flat, jnp.zeros((1, input_dim), jnp.float32)], axis=0)
    enc_out = fused_mlp_ln([enc_in], params["node_encoder"])
    obs_out = enc_out[:B * n_obs].reshape(B, n_obs, output_dim)
    h3_row = enc_out[B * n_obs]
    out = jnp.concatenate(
        [obs_out, jnp.broadcast_to(h3_row[None, None, :], (B, n_h3, output_dim))],
        axis=1).reshape(B * n_total, output_dim)

    # --- edge encoder (encode once, tile over batch, as in the torch code) --
    edge_attr = fused_mlp_ln([jnp.asarray(in_eattr)], params["edge_encoder"])
    edge_attr = jnp.tile(edge_attr, (B, 1))                    # (repeat e) f

    # --- batch the input-graph edge index (exactly as in the torch code) ----
    mx = int(in_ei.max())
    edge_index = np.concatenate([in_ei + i * mx + i for i in range(B)], axis=1)
    row = jnp.asarray(edge_index[0])
    col = jnp.asarray(edge_index[1])

    # --- GraphProcessor with 1 message-passing block -------------------------
    # EdgeProcessor: MLP(cat(x[row], x[col], e)) + e, with the concat fused
    # into the kernel via split W1 (src@W1a + dst@W1b + e@W1c).
    src = jnp.take(out, row, axis=0)      # row gather kept as XLA glue
    dst = jnp.take(out, col, axis=0)
    new_edge_attr = fused_mlp_ln([src, dst, edge_attr], params["gp_edge"],
                                 residual_idx=2)

    # NodeProcessor: MLP(cat(x, scatter_sum(e, col))) + x, fully fused
    # (scatter-add + concat + MLP + LN + residual) in one Pallas kernel.
    out = node_processor(out, new_edge_attr, col, params["gp_node"])

    # --- split off the h3 (latent) nodes -------------------------------------
    out = out.reshape(B, n_total, output_dim)[:, n_obs:, :]
    out = out.reshape(B * n_h3, output_dim)

    # --- latent graph outputs (encode once, tile over batch) -----------------
    lmx = int(lat_ei.max())
    lat_edge_index = jnp.asarray(
        np.concatenate([lat_ei + i * lmx + i for i in range(B)], axis=1))
    lat_edge_attr = fused_mlp_ln([jnp.asarray(lat_eattr)],
                                 params["latent_edge_encoder"])
    lat_edge_attr = jnp.tile(lat_edge_attr, (B, 1))

    return out, lat_edge_index, lat_edge_attr


# ---------------------------------------------------------------------------
# main
# ---------------------------------------------------------------------------
if __name__ == "__main__":
    key = jax.random.PRNGKey(0)
    B, N_OBS, N_H3 = 2, 8, 16
    INPUT_DIM = 2
    OUTPUT_DIM = OUTPUT_EDGE_DIM = 32
    HID_NODE = HID_EDGE = 32

    kf, kl, kp = jax.random.split(key, 3)
    features = jax.random.normal(kf, (B, N_OBS, INPUT_DIM), jnp.float32)
    lat_lon_heights = jax.random.uniform(
        kl, (N_OBS, 3), jnp.float32, 0.0, 1.0) * jnp.array([180.0, 360.0, 10.0])

    params = make_assimilator_params(kp, INPUT_DIM, OUTPUT_DIM,
                                     OUTPUT_EDGE_DIM, HID_NODE, HID_EDGE)
    graph = build_synthetic_graphs(N_OBS, N_H3,
                                   np.asarray(lat_lon_heights[:, 2]))

    out, latent_edge_index, latent_edge_attr = assimilator_encoder_forward(
        params, features, lat_lon_heights, graph, N_H3, OUTPUT_DIM)

    out = jax.block_until_ready(out)
    latent_edge_index = jax.block_until_ready(latent_edge_index)
    latent_edge_attr = jax.block_until_ready(latent_edge_attr)

    assert out.shape == (B * N_H3, OUTPUT_DIM)
    assert latent_edge_index.shape == (2, B * N_H3 * 7)
    assert latent_edge_attr.shape == (B * N_H3 * 7, OUTPUT_EDGE_DIM)
    assert bool(jnp.all(jnp.isfinite(out)))
    assert bool(jnp.all(jnp.isfinite(latent_edge_attr)))

    print("KERNEL_OK")
</pallas_src>

<mosaic_0001>
module attributes {stable_mosaic.version = 11 : i64} {
  func.func @kernel(%arg0: i32, %arg1: memref<24x8xf32, #tpu.memory_space<vmem>>, %arg2: memref<8x32xbf16, #tpu.memory_space<vmem>>, %arg3: memref<1x32xf32, #tpu.memory_space<vmem>>, %arg4: memref<32x32xbf16, #tpu.memory_space<vmem>>, %arg5: memref<1x32xf32, #tpu.memory_space<vmem>>, %arg6: memref<32x32xbf16, #tpu.memory_space<vmem>>, %arg7: memref<1x32xf32, #tpu.memory_space<vmem>>, %arg8: memref<1x32xf32, #tpu.memory_space<vmem>>, %arg9: memref<1x32xf32, #tpu.memory_space<vmem>>, %arg10: memref<24x32xf32, #tpu.memory_space<vmem>>) attributes {dimension_semantics = [#tpu.dimension_semantics<parallel>], iteration_bounds = array<i64: 1>, scalar_prefetch = 0 : i64, scratch_operands = 0 : i64, tpu.core_type = #tpu.core_type<tc>, window_params = [{transform_indices = @transform_0, window_bounds = array<i64: 24, 8>}, {pipeline_mode = #tpu.pipeline_mode<synchronous>, transform_indices = @transform_1, window_bounds = array<i64: 8, 32>}, {pipeline_mode = #tpu.pipeline_mode<synchronous>, transform_indices = @transform_2, window_bounds = array<i64: 1, 32>}, {pipeline_mode = #tpu.pipeline_mode<synchronous>, transform_indices = @transform_3, window_bounds = array<i64: 32, 32>}, {pipeline_mode = #tpu.pipeline_mode<synchronous>, transform_indices = @transform_4, window_bounds = array<i64: 1, 32>}, {pipeline_mode = #tpu.pipeline_mode<synchronous>, transform_indices = @transform_5, window_bounds = array<i64: 32, 32>}, {pipeline_mode = #tpu.pipeline_mode<synchronous>, transform_indices = @transform_6, window_bounds = array<i64: 1, 32>}, {pipeline_mode = #tpu.pipeline_mode<synchronous>, transform_indices = @transform_7, window_bounds = array<i64: 1, 32>}, {pipeline_mode = #tpu.pipeline_mode<synchronous>, transform_indices = @transform_8, window_bounds = array<i64: 1, 32>}, {transform_indices = @transform_9, window_bounds = array<i64: 24, 32>}]} {
    %c0 = arith.constant 0 : index
    %c0_0 = arith.constant 0 : index
    %0 = vector.load %arg1[%c0, %c0_0] : memref<24x8xf32, #tpu.memory_space<vmem>>, vector<24x8xf32>
    %1 = arith.truncf %0 : vector<24x8xf32> to vector<24x8xbf16>
    %c0_1 = arith.constant 0 : index
    %c0_2 = arith.constant 0 : index
    %2 = vector.load %arg2[%c0_1, %c0_2] : memref<8x32xbf16, #tpu.memory_space<vmem>>, vector<8x32xbf16>
    %cst = arith.constant dense<0.000000e+00> : vector<24x32xf32>
    %3 = tpu.matmul %1, %2, %cst {dimension_numbers = #tpu.dot_dimension_numbers<[1], [0], [0], [1], [0, 0, 1, 1], [], []>} : vector<24x8xbf16>, vector<8x32xbf16>, vector<24x32xf32> -> vector<24x32xf32>
    %c0_3 = arith.constant 0 : index
    %c0_4 = arith.constant 0 : index
    %4 = vector.load %arg3[%c0_3, %c0_4] : memref<1x32xf32, #tpu.memory_space<vmem>>, vector<1x32xf32>
    %5 = vector.broadcast %4 : vector<1x32xf32> to vector<24x32xf32>
    %6 = arith.addf %3, %5 : vector<24x32xf32>
    %cst_5 = arith.constant 0.000000e+00 : f32
    %7 = vector.broadcast %cst_5 : f32 to vector<24x32xf32>
    %8 = arith.maximumf %6, %7 : vector<24x32xf32>
    %9 = arith.truncf %8 : vector<24x32xf32> to vector<24x32xbf16>
    %c0_6 = arith.constant 0 : index
    %c0_7 = arith.constant 0 : index
    %10 = vector.load %arg4[%c0_6, %c0_7] : memref<32x32xbf16, #tpu.memory_space<vmem>>, vector<32x32xbf16>
    %cst_8 = arith.constant dense<0.000000e+00> : vector<24x32xf32>
    %11 = tpu.matmul %9, %10, %cst_8 {dimension_numbers = #tpu.dot_dimension_numbers<[1], [0], [0], [1], [0, 0, 1, 1], [], []>} : vector<24x32xbf16>, vector<32x32xbf16>, vector<24x32xf32> -> vector<24x32xf32>
    %c0_9 = arith.constant 0 : index
    %c0_10 = arith.constant 0 : index
    %12 = vector.load %arg5[%c0_9, %c0_10] : memref<1x32xf32, #tpu.memory_space<vmem>>, vector<1x32xf32>
    %13 = vector.broadcast %12 : vector<1x32xf32> to vector<24x32xf32>
    %14 = arith.addf %11, %13 : vector<24x32xf32>
    %cst_11 = arith.constant 0.000000e+00 : f32
    %15 = vector.broadcast %cst_11 : f32 to vector<24x32xf32>
    %16 = arith.maximumf %14, %15 : vector<24x32xf32>
    %17 = arith.truncf %16 : vector<24x32xf32> to vector<24x32xbf16>
    %c0_12 = arith.constant 0 : index
    %c0_13 = arith.constant 0 : index
    %18 = vector.load %arg6[%c0_12, %c0_13] : memref<32x32xbf16, #tpu.memory_space<vmem>>, vector<32x32xbf16>
    %cst_14 = arith.constant dense<0.000000e+00> : vector<24x32xf32>
    %19 = tpu.matmul %17, %18, %cst_14 {dimension_numbers = #tpu.dot_dimension_numbers<[1], [0], [0], [1], [0, 0, 1, 1], [], []>} : vector<24x32xbf16>, vector<32x32xbf16>, vector<24x32xf32> -> vector<24x32xf32>
    %c0_15 = arith.constant 0 : index
    %c0_16 = arith.constant 0 : index
    %20 = vector.load %arg7[%c0_15, %c0_16] : memref<1x32xf32, #tpu.memory_space<vmem>>, vector<1x32xf32>
    %21 = vector.broadcast %20 : vector<1x32xf32> to vector<24x32xf32>
    %22 = arith.addf %19, %21 : vector<24x32xf32>
    %cst_17 = arith.constant dense<0.000000e+00> : vector<24xf32>
    %23 = vector.multi_reduction <add>, %22, %cst_17 [1] : vector<24x32xf32> to vector<24xf32>
    %24 = vector.shape_cast %23 : vector<24xf32> to vector<24x1xf32>
    %cst_18 = arith.constant 3.200000e+01 : f32
    %25 = vector.broadcast %cst_18 : f32 to vector<24x1xf32>
    %26 = arith.divf %24, %25 : vector<24x1xf32>
    %27 = vector.broadcast %26 : vector<24x1xf32> to vector<24x32xf32>
    %28 = arith.subf %22, %27 : vector<24x32xf32>
    %29 = arith.mulf %28, %28 : vector<24x32xf32>
    %cst_19 = arith.constant dense<0.000000e+00> : vector<24xf32>
    %30 = vector.multi_reduction <add>, %29, %cst_19 [1] : vector<24x32xf32> to vector<24xf32>
    %31 = vector.shape_cast %30 : vector<24xf32> to vector<24x1xf32>
    %cst_20 = arith.constant 3.200000e+01 : f32
    %32 = vector.broadcast %cst_20 : f32 to vector<24x1xf32>
    %33 = arith.divf %31, %32 : vector<24x1xf32>
    %34 = vector.broadcast %26 : vector<24x1xf32> to vector<24x32xf32>
    %35 = arith.subf %22, %34 : vector<24x32xf32>
    %cst_21 = arith.constant 9.99999974E-6 : f32
    %36 = vector.broadcast %cst_21 : f32 to vector<24x1xf32>
    %37 = arith.addf %33, %36 : vector<24x1xf32>
    %38 = math.rsqrt %37 : vector<24x1xf32>
    %39 = vector.broadcast %38 : vector<24x1xf32> to vector<24x32xf32>
    %40 = arith.mulf %35, %39 : vector<24x32xf32>
    %c0_22 = arith.constant 0 : index
    %c0_23 = arith.constant 0 : index
    %41 = vector.load %arg8[%c0_22, %c0_23] : memref<1x32xf32, #tpu.memory_space<vmem>>, vector<1x32xf32>
    %42 = vector.broadcast %41 : vector<1x32xf32> to vector<24x32xf32>
    %43 = arith.mulf %40, %42 : vector<24x32xf32>
    %c0_24 = arith.constant 0 : index
    %c0_25 = arith.constant 0 : index
    %44 = vector.load %arg9[%c0_24, %c0_25] : memref<1x32xf32, #tpu.memory_space<vmem>>, vector<1x32xf32>
    %45 = vector.broadcast %44 : vector<1x32xf32> to vector<24x32xf32>
    %46 = arith.addf %43, %45 : vector<24x32xf32>
    %c0_26 = arith.constant 0 : index
    %c0_27 = arith.constant 0 : index
    %47 = vector.load %arg10[%c0_26, %c0_27] : memref<24x32xf32, #tpu.memory_space<vmem>>, vector<24x32xf32>
    tpu.vector_store %arg10[%c0_26, %c0_27], %46 {strides = array<i32>} : memref<24x32xf32, #tpu.memory_space<vmem>>, vector<24x32xf32>,
    return
  }
  func.func @transform_0(%arg0: i32) -> (i32, i32) {
    %c0_i32 = arith.constant 0 : i32
    %c0_i32_0 = arith.constant 0 : i32
    return %arg0, %c0_i32 : i32, i32
  }
  func.func @transform_1(%arg0: i32) -> (i32, i32) {
    %c0_i32 = arith.constant 0 : i32
    %c0_i32_0 = arith.constant 0 : i32
    %c0_i32_1 = arith.constant 0 : i32
    return %c0_i32, %c0_i32_0 : i32, i32
  }
  func.func @transform_2(%arg0: i32) -> (i32, i32) {
    %c0_i32 = arith.constant 0 : i32
    %c0_i32_0 = arith.constant 0 : i32
    %c0_i32_1 = arith.constant 0 : i32
    return %c0_i32, %c0_i32_0 : i32, i32
  }
  func.func @transform_3(%arg0: i32) -> (i32, i32) {
    %c0_i32 = arith.constant 0 : i32
    %c0_i32_0 = arith.constant 0 : i32
    %c0_i32_1 = arith.constant 0 : i32
    return %c0_i32, %c0_i32_0 : i32, i32
  }
  func.func @transform_4(%arg0: i32) -> (i32, i32) {
    %c0_i32 = arith.constant 0 : i32
    %c0_i32_0 = arith.constant 0 : i32
    %c0_i32_1 = arith.constant 0 : i32
    return %c0_i32, %c0_i32_0 : i32, i32
  }
  func.func @transform_5(%arg0: i32) -> (i32, i32) {
    %c0_i32 = arith.constant 0 : i32
    %c0_i32_0 = arith.constant 0 : i32
    %c0_i32_1 = arith.constant 0 : i32
    return %c0_i32, %c0_i32_0 : i32, i32
  }
  func.func @transform_6(%arg0: i32) -> (i32, i32) {
    %c0_i32 = arith.constant 0 : i32
    %c0_i32_0 = arith.constant 0 : i32
    %c0_i32_1 = arith.constant 0 : i32
    return %c0_i32, %c0_i32_0 : i32, i32
  }
  func.func @transform_7(%arg0: i32) -> (i32, i32) {
    %c0_i32 = arith.constant 0 : i32
    %c0_i32_0 = arith.constant 0 : i32
    %c0_i32_1 = arith.constant 0 : i32
    return %c0_i32, %c0_i32_0 : i32, i32
  }
  func.func @transform_8(%arg0: i32) -> (i32, i32) {
    %c0_i32 = arith.constant 0 : i32
    %c0_i32_0 = arith.constant 0 : i32
    %c0_i32_1 = arith.constant 0 : i32
    return %c0_i32, %c0_i32_0 : i32, i32
  }
  func.func @transform_9(%arg0: i32) -> (i32, i32) {
    %c0_i32 = arith.constant 0 : i32
    %c0_i32_0 = arith.constant 0 : i32
    return %arg0, %c0_i32 : i32, i32
  }
}

</mosaic_0001>

<llo_original>
// kernel: tpu_custom_call.1
$region0: #{tpu_custom_call.1}
  #allocation0 [shape = 'u32[]', space=smem, size = 0x4, offset = 0x4, fixed_abs, tag = 'smem constant byte address 0x4 - core index']
  #allocation1 [shape = 'u32[72,128]{1,0:T(1,128)}', space=vmem, size = 0x9000, scoped, tag = 'internal scratch']
  %s0 = inlined_call_operand.vmem [shape: f32[24,8], index: 0, kind: input, shape index: {}]
  %s1 = inlined_call_operand.hbm [shape: bf16[8,32], index: 1, kind: input, shape index: {}]
  %s2 = inlined_call_operand.vmem [shape: f32[1,32], index: 2, kind: input, shape index: {}]
  %s3 = inlined_call_operand.vmem [shape: bf16[32,32], index: 3, kind: input, shape index: {}]
  %s4 = inlined_call_operand.vmem [shape: f32[1,32], index: 4, kind: input, shape index: {}]
  %s5 = inlined_call_operand.vmem [shape: bf16[32,32], index: 5, kind: input, shape index: {}]
  %s6 = inlined_call_operand.vmem [shape: f32[1,32], index: 6, kind: input, shape index: {}]
  %s7 = inlined_call_operand.vmem [shape: f32[1,32], index: 7, kind: input, shape index: {}]
  %s8 = inlined_call_operand.vmem [shape: f32[1,32], index: 8, kind: input, shape index: {}]
  %s9 = inlined_call_operand.hbm [shape: f32[24,32], index: 9, kind: output, shape index: {}]
  %s10 = sld [smem:[#allocation0]]
  $region50: #{tpu_custom_call.1} parent=0
    _
  %s12 = ssub.s32 1, %s10
  %s13 = scalar_select 0, %s12, %s10
  $region1: #{tpu_custom_call.1} parent=0
    #allocation2 [shape = 'u8[2048]{0}', space=vmem, size = 0x800, scoped, tag = 'input window, operand 1, single buffered']
    #allocation3 [shape = 's32[1]{0}', space=sflag, size = 0x4, scoped, tag = 'scoped memory for tpu_custom_call.1']
    #allocation4 [shape = 's32[1]{0}', space=sflag, size = 0x4, scoped, tag = 'scoped memory for tpu_custom_call.1']
    #allocation5 [shape = 'u8[12288]{0}', space=vmem, size = 0x3000, scoped, tag = 'output window, operand 0, single buffered']
    %14 = vsyncpa [#allocation3], 0
    %15 = vsyncpa [#allocation4], 0
    // Predicated region
    $region2: #{tpu_custom_call.1} parent=1 // pred_check
      _
    $region3: #{tpu_custom_call.1} parent=1 // pred_check_branch
      %17 = sbr.rel (0) target = $region5
    $region4: #{tpu_custom_call.1} parent=1 // pred_region
      _
    $region5: #{tpu_custom_call.1} parent=1 // pred_fallthru
      _
    // Predicated region
    $region6: #{tpu_custom_call.1} parent=1 // pred_check
      _
    $region7: #{tpu_custom_call.1} parent=1 // pred_check_branch
      %19 = sbr.rel (0) target = $region9
    $region8: #{tpu_custom_call.1} parent=1 // pred_region
      %21 = vsyncadd [#allocation3], 0
      %s23 = sshll.u32 %s1, 4
      %s24 = int_to_ptr.hbm [resolvable:$true] %s23
      %s25 = sshll.u32 [#allocation2], 4
      %s26 = int_to_ptr.vmem [resolvable:$true] %s25
      %28 = dma.hbm_to_vmem [thread:$0]  %s24, 64, %s26, [#allocation3]
    $region9: #{tpu_custom_call.1} parent=1 // pred_fallthru
      _
    // Predicated region
    $region10: #{tpu_custom_call.1} parent=1 // pred_check
      _
    $region11: #{tpu_custom_call.1} parent=1 // pred_check_branch
      %30 = sbr.rel (0) target = $region13
    $region12: #{tpu_custom_call.1} parent=1 // pred_region
      _
    $region13: #{tpu_custom_call.1} parent=1 // pred_fallthru
      _
    // Predicated region
    $region14: #{tpu_custom_call.1} parent=1 // pred_check
      _
    $region15: #{tpu_custom_call.1} parent=1 // pred_check_branch
      %32 = sbr.rel (0) target = $region17
    $region16: #{tpu_custom_call.1} parent=1 // pred_region
      _
    $region17: #{tpu_custom_call.1} parent=1 // pred_fallthru
      _
    // Predicated region
    $region18: #{tpu_custom_call.1} parent=1 // pred_check
      _
    $region19: #{tpu_custom_call.1} parent=1 // pred_check_branch
      %34 = sbr.rel (0) target = $region21
    $region20: #{tpu_custom_call.1} parent=1 // pred_region
      _
    $region21: #{tpu_custom_call.1} parent=1 // pred_fallthru
      _
    // Predicated region
    $region22: #{tpu_custom_call.1} parent=1 // pred_check
      _
    $region23: #{tpu_custom_call.1} parent=1 // pred_check_branch
      %36 = sbr.rel (0) target = $region25
    $region24: #{tpu_custom_call.1} parent=1 // pred_region
      _
    $region25: #{tpu_custom_call.1} parent=1 // pred_fallthru
      _
    // Predicated region
    $region26: #{tpu_custom_call.1} parent=1 // pred_check
      _
    $region27: #{tpu_custom_call.1} parent=1 // pred_check_branch
      %38 = sbr.rel (0) target = $region29
    $region28: #{tpu_custom_call.1} parent=1 // pred_region
      _
    $region29: #{tpu_custom_call.1} parent=1 // pred_fallthru
      _
    // Predicated region
    $region30: #{tpu_custom_call.1} parent=1 // pred_check
      _
    $region31: #{tpu_custom_call.1} parent=1 // pred_check_branch
      %40 = sbr.rel (0) target = $region33
    $region32: #{tpu_custom_call.1} parent=1 // pred_region
      _
    $region33: #{tpu_custom_call.1} parent=1 // pred_fallthru
      _
    // Predicated region
    $region34: #{tpu_custom_call.1} parent=1 // pred_check
      _
    $region35: #{tpu_custom_call.1} parent=1 // pred_check_branch
      %42 = sbr.rel (0) target = $region37
    $region36: #{tpu_custom_call.1} parent=1 // pred_region
      _
    $region37: #{tpu_custom_call.1} parent=1 // pred_fallthru
      _
    // Predicated region
    $region38: #{tpu_custom_call.1} parent=1 // pred_check
      _
    $region39: #{tpu_custom_call.1} parent=1 // pred_check_branch
      %44 = sbr.rel (0) target = $region41
    $region40: #{tpu_custom_call.1} parent=1 // pred_region
      %46 = dma.done [#allocation3], 64
    $region41: #{tpu_custom_call.1} parent=1 // pred_fallthru
      _
    %v48 = vld [vmem:[%s0] sm:$0xff]
    %v49 = vld [vmem:[%s0 + $0x8] sm:$0xff]
    %v50 = vld [vmem:[%s0 + $0x10] sm:$0xff]
    %v51 = vpack.c.bf16 %v49, %v48
    %v52 = vpack.c.bf16 %v50, %v50
    %v53 = vld [vmem:[#allocation2] sm:$0xf]
    %v54 = vld [vmem:[%s2] sm:$0x1]
    %v56 = vperm.slane %v54, 0
    %vm58 = vcmask 64512
    %v60 = vsel %vm58, %v51, 0
    %v63 = vsel %vm58, %v52, 0
    %vm65 = vcmask 1043456
    %v67 = vsel %vm65, %v53, 0
    %69 = vmatpush.bf16.msra.mxu0 0
    %70 = vmatpush.bf16.msra.mxu0 0
    %71 = vmatpush.bf16.msra.mxu0 0
    %72 = vmatpush.bf16.msra.mxu0 0
    %73 = vmatpush.bf16.msra.mxu0 0
    %74 = vmatpush.bf16.msra.mxu0 0
    %75 = vmatpush.bf16.msra.mxu0 0
    %76 = vmatpush.bf16.msra.mxu0 %v67
    %77 = vmatmul.bf16.gmra.mxu0 %v60
    %v78 = vpop.f32.mrf.mxu0
    %v79 = vadd.f32 %v56, %v78
    %v80 = vpop.f32.mrf.mxu0
    %v81 = vadd.f32 %v56, %v80
    %82 = vmatmul.bf16.gmra.mxu0 %v63
    %v83 = vpop.f32.mrf.mxu0
    %v84 = vadd.f32 %v56, %v83
    %v85 = vpop.f32.mrf.mxu0
    %86 = vdwg.mxu0
    %v87 = vmax.f32 %v79, 0.0
    %v88 = vmax.f32 %v81, 0.0
    %v89 = vmax.f32 %v84, 0.0
    %v90 = vpack.c.bf16 %v88, %v87
    %v91 = vpack.c.bf16 %v89, %v89
    %v92 = vld [vmem:[%s3] sm:$0xf]
    %v93 = vld [vmem:[%s3 + $0x4] sm:$0xf]
    %v94 = vld [vmem:[%s3 + $0x8] sm:$0xf]
    %v95 = vld [vmem:[%s3 + $0xc] sm:$0xf]
    %v96 = vld [vmem:[%s4] sm:$0x1]
    %v98 = vperm.slane %v96, 0
    %v104 = vunpack.c.l.b16 %v92
    %v105 = vunpack.c.l.b16 %v93
    %v106 = vunpack.c.l.b16 %v94
    %v107 = vunpack.c.l.b16 %v95
    %v108 = vpack.c.b16 %v105, %v104
    %v109 = vpack.c.b16 %v107, %v106
    %vm112 = vcmask 261120
    %v114 = vsel %vm112, %v90, 0
    %v117 = vsel %vm112, %v91, 0
    %119 = vmatpush.bf16.msra.mxu0 0
    %120 = vmatpush.bf16.msra.mxu0 0
    %121 = vmatpush.bf16.msra.mxu0 0
    %122 = vmatpush.bf16.msra.mxu0 0
    %123 = vmatpush.bf16.msra.mxu0 0
    %124 = vmatpush.bf16.msra.mxu0 0
    %125 = vmatpush.bf16.msra.mxu0 %v109
    %126 = vmatpush.bf16.msra.mxu0 %v108
    %127 = vmatmul.bf16.gmra.mxu0 %v114
    %v128 = vpop.f32.mrf.mxu0
    %v129 = vadd.f32 %v98, %v128
    %v130 = vpop.f32.mrf.mxu0
    %v131 = vadd.f32 %v98, %v130
    %132 = vmatmul.bf16.gmra.mxu0 %v117
    %v133 = vpop.f32.mrf.mxu0
    %v134 = vadd.f32 %v98, %v133
    %v135 = vpop.f32.mrf.mxu0
    %136 = vdwg.mxu0
    %v137 = vmax.f32 %v129, 0.0
    %v138 = vmax.f32 %v131, 0.0
    %v139 = vmax.f32 %v134, 0.0
    %v140 = vpack.c.bf16 %v138, %v137
    %v141 = vpack.c.bf16 %v139, %v139
    %v142 = vld [vmem:[%s5] sm:$0xf]
    %v143 = vld [vmem:[%s5 + $0x4] sm:$0xf]
    %v144 = vld [vmem:[%s5 + $0x8] sm:$0xf]
    %v145 = vld [vmem:[%s5 + $0xc] sm:$0xf]
    %v146 = vld [vmem:[%s6] sm:$0x1]
    %v148 = vperm.slane %v146, 0
    %v154 = vunpack.c.l.b16 %v142
    %v155 = vunpack.c.l.b16 %v143
    %v156 = vunpack.c.l.b16 %v144
    %v157 = vunpack.c.l.b16 %v145
    %v158 = vpack.c.b16 %v155, %v154
    %v159 = vpack.c.b16 %v157, %v156
    %v163 = vsel %vm112, %v140, 0
    %v166 = vsel %vm112, %v141, 0
    %168 = vmatpush.bf16.msra.mxu0 0
    %169 = vmatpush.bf16.msra.mxu0 0
    %170 = vmatpush.bf16.msra.mxu0 0
    %171 = vmatpush.bf16.msra.mxu0 0
    %172 = vmatpush.bf16.msra.mxu0 0
    %173 = vmatpush.bf16.msra.mxu0 0
    %174 = vmatpush.bf16.msra.mxu0 %v159
    %175 = vmatpush.bf16.msra.mxu0 %v158
    %176 = vmatmul.bf16.gmra.mxu0 %v163
    %v177 = vpop.f32.mrf.mxu0
    %v178 = vadd.f32 %v148, %v177
    %v179 = vpop.f32.mrf.mxu0
    %v180 = vadd.f32 %v148, %v179
    %181 = vmatmul.bf16.gmra.mxu0 %v166
    %v182 = vpop.f32.mrf.mxu0
    %v183 = vadd.f32 %v148, %v182
    %v184 = vpop.f32.mrf.mxu0
    %185 = vdwg.mxu0
    %v186 = vsel %vm112, %v178, 0.0
    %187 = vadd.xlane.f32.xlu0 %v186
    %v188 = vpop.xlane.xlu0 %187
    %v189 = vsel %vm112, %v180, 0.0
    %190 = vadd.xlane.f32.xlu0 %v189
    %v191 = vpop.xlane.xlu0 %190
    %v192 = vsel %vm112, %v183, 0.0
    %193 = vadd.xlane.f32.xlu0 %v192
    %v194 = vpop.xlane.xlu0 %193
    %v195 = vrcp.pop 32.0
    %v196 = vmul.f32 32.0, %v195
    %v197 = vsub.f32 1.0, %v196
    %v198 = vmul.f32 %v195, %v197
    %v199 = vadd.f32 %v195, %v198
    %vm200 = vweird.f32 %v195
    %v201 = vsel %vm200, %v195, %v199
    %v202 = vmul.f32 %v188, %v201
    %v203 = vmul.f32 %v191, %v201
    %v204 = vmul.f32 %v194, %v201
    %v205 = vsub.f32 %v178, %v202
    %v206 = vsub.f32 %v180, %v203
    %v207 = vsub.f32 %v183, %v204
    %v208 = vmul.f32 %v205, %v205
    %v209 = vmul.f32 %v206, %v206
    %v210 = vmul.f32 %v207, %v207
    %v211 = vsel %vm112, %v208, 0.0
    %212 = vadd.xlane.f32.xlu0 %v211
    %v213 = vpop.xlane.xlu0 %212
    %v214 = vsel %vm112, %v209, 0.0
    %215 = vadd.xlane.f32.xlu0 %v214
    %v216 = vpop.xlane.xlu0 %215
    %v217 = vsel %vm112, %v210, 0.0
    %218 = vadd.xlane.f32.xlu0 %v217
    %v219 = vpop.xlane.xlu0 %218
    %v220 = vmul.f32 %v213, %v201
    %v221 = vmul.f32 %v216, %v201
    %v222 = vmul.f32 %v219, %v201
    %v223 = vadd.f32 %v220, 1e-05
    %v224 = vadd.f32 %v221, 1e-05
    %v225 = vadd.f32 %v222, 1e-05
    %v226 = vrsqrt.pop %v223
    %v227 = vmul.f32 %v226, %v223
    %v228 = vmul.f32 %v227, %v226
    %v229 = vmul.f32 0.5, %v228
    %v230 = vsub.f32 1.5, %v229
    %v231 = vmul.f32 %v226, %v230
    %vm232 = vweird.f32 %v223
    %vm233 = vweird.f32 %v226
    %vm234 = vmor %vm232, %vm233
    %v235 = vsel %vm234, %v226, %v231
    %v236 = vrsqrt.pop %v224
    %v237 = vmul.f32 %v236, %v224
    %v238 = vmul.f32 %v237, %v236
    %v239 = vmul.f32 0.5, %v238
    %v240 = vsub.f32 1.5, %v239
    %v241 = vmul.f32 %v236, %v240
    %vm242 = vweird.f32 %v224
    %vm243 = vweird.f32 %v236
    %vm244 = vmor %vm242, %vm243
    %v245 = vsel %vm244, %v236, %v241
    %v246 = vrsqrt.pop %v225
    %v247 = vmul.f32 %v246, %v225
    %v248 = vmul.f32 %v247, %v246
    %v249 = vmul.f32 0.5, %v248
    %v250 = vsub.f32 1.5, %v249
    %v251 = vmul.f32 %v246, %v250
    %vm252 = vweird.f32 %v225
    %vm253 = vweird.f32 %v246
    %vm254 = vmor %vm252, %vm253
    %v255 = vsel %vm254, %v246, %v251
    %v256 = vmul.f32 %v205, %v235
    %v257 = vmul.f32 %v206, %v245
    %v258 = vmul.f32 %v207, %v255
    %v259 = vld [vmem:[%s7] sm:$0x1]
    %v261 = vperm.slane %v259, 0
    %v263 = vmul.f32 %v256, %v261
    %v264 = vmul.f32 %v257, %v261
    %v265 = vmul.f32 %v258, %v261
    %v266 = vld [vmem:[%s8] sm:$0x1]
    %v268 = vperm.slane %v266, 0
    %v270 = vadd.f32 %v263, %v268
    %v271 = vadd.f32 %v264, %v268
    %v272 = vadd.f32 %v265, %v268
    %273 = vst.msk [vmem:[#allocation5] sm:$0xff] %vm112, %v270
    %274 = vst.msk [vmem:[#allocation5 + $0x8] sm:$0xff] %vm112, %v271
    %275 = vst.msk [vmem:[#allocation5 + $0x10] sm:$0xff] %vm112, %v272
    // Predicated region
    $region42: #{tpu_custom_call.1} parent=1 // pred_check
      _
    $region43: #{tpu_custom_call.1} parent=1 // pred_check_branch
      %277 = sbr.rel (0) target = $region45
    $region44: #{tpu_custom_call.1} parent=1 // pred_region
      %279 = vsyncadd [#allocation4], 0
      %s280 = sshll.u32 [#allocation5], 4
      %s281 = int_to_ptr.vmem [resolvable:$true] %s280
      %s282 = sshll.u32 %s9, 4
      %s283 = int_to_ptr.hbm [resolvable:$true] %s282
      %288 = dma.vmem_to_hbm [thread:$0]  %s281, 384, %s283, [#allocation4], 128, 128, 8
    $region45: #{tpu_custom_call.1} parent=1 // pred_fallthru
      _
    // Predicated region
    $region46: #{tpu_custom_call.1} parent=1 // pred_check
      _
    $region47: #{tpu_custom_call.1} parent=1 // pred_check_branch
      %290 = sbr.rel (0) target = $region49
    $region48: #{tpu_custom_call.1} parent=1 // pred_region
      %292 = dma.done [#allocation4], 384
    $region49: #{tpu_custom_call.1} parent=1 // pred_fallthru
      _
    %293 = vsyncpa [#allocation3], 1
    %294 = vsyncpa [#allocation4], 1

</llo_original>
